<compile_context>
chip_gen: v5e
topology: v5e:2x2
jax: 0.10.0
libtpu: 0.0.40
codegen_flags: <defaults>
</compile_context>

<pallas_src>
import functools

import jax
import jax.numpy as jnp
from jax.experimental import pallas as pl
from jax.experimental.pallas import tpu as pltpu

LANES = 128
MAX_TILE_ROWS = 2048          # 2048 x 128 x 4B = 1 MiB f32 per input block
NUM_PARALLEL_SHARDS = 2       # leading "parallel" grid axis (v7x megacore)
PAD_LOGIT = -1.0e4            # BCE(x=-1e4, y=0) == 0 exactly in f32


def _bce_sum_kernel(x_ref, y_ref, part_ref, acc_ref, *, tile_rows, tiles_per_shard):
    k = pl.program_id(1)

    @pl.when(k == 0)
    def _():
        acc_ref[...] = jnp.zeros_like(acc_ref)

    x = x_ref[...].astype(jnp.float32)
    y = y_ref[...].astype(jnp.float32)

    # Numerically-stable BCE-with-logits (same formulation PyTorch uses):
    #   loss = max(x, 0) - x*y + log(1 + exp(-|x|))
    loss = jnp.maximum(x, 0.0) - x * y + jnp.log1p(jnp.exp(-jnp.abs(x)))

    # Reduce the tile to a single vreg-sized (8, 128) partial before
    # accumulating (cheap chain of VPU adds; no cross-lane work per tile).
    acc_ref[...] += jnp.sum(loss.reshape(tile_rows // 8, 8, LANES), axis=0)

    @pl.when(k == tiles_per_shard - 1)
    def _():
        part_ref[0, 0] = jnp.sum(acc_ref[...])


def _bce_with_logits_mean(extract_info, hiding_info):
    """Mean BCE-with-logits over all elements, computed in a Pallas kernel."""
    n = extract_info.size
    x = extract_info.reshape(-1)
    y = hiding_info.reshape(-1)

    rows = pl.cdiv(n, LANES)

    # Adaptive tiling: choose tile count first, then right-size the tile so
    # padding waste is at most ~8 rows per tile.
    total_tiles = pl.cdiv(rows, MAX_TILE_ROWS)
    num_shards = NUM_PARALLEL_SHARDS if total_tiles >= NUM_PARALLEL_SHARDS else 1
    total_tiles = pl.cdiv(total_tiles, num_shards) * num_shards
    tile_rows = pl.cdiv(pl.cdiv(rows, total_tiles), 8) * 8
    tiles_per_shard = total_tiles // num_shards
    rows_padded = total_tiles * tile_rows
    pad = rows_padded * LANES - n

    if pad > 0:  # static check — no copies at all when already aligned
        # Padded logits -> exactly-zero loss contribution, so no in-kernel mask.
        x = jnp.pad(x, (0, pad), constant_values=PAD_LOGIT)
        y = jnp.pad(y, (0, pad))

    x2 = x.reshape(rows_padded, LANES)
    y2 = y.reshape(rows_padded, LANES)

    kernel = functools.partial(
        _bce_sum_kernel, tile_rows=tile_rows, tiles_per_shard=tiles_per_shard)

    partials = pl.pallas_call(
        kernel,
        out_shape=jax.ShapeDtypeStruct((num_shards, 1), jnp.float32),
        grid_spec=pltpu.PrefetchScalarGridSpec(
            num_scalar_prefetch=0,
            grid=(num_shards, tiles_per_shard),
            in_specs=[
                pl.BlockSpec((tile_rows, LANES),
                             lambda c, k: (c * tiles_per_shard + k, 0)),
                pl.BlockSpec((tile_rows, LANES),
                             lambda c, k: (c * tiles_per_shard + k, 0)),
            ],
            out_specs=pl.BlockSpec(
                (1, 1), lambda c, k: (c, 0), memory_space=pltpu.SMEM),
            scratch_shapes=[pltpu.VMEM((8, LANES), jnp.float32)],
        ),
        compiler_params=pltpu.CompilerParams(
            dimension_semantics=("parallel", "arbitrary")),
    )(x2, y2)

    return jnp.sum(partials) * (1.0 / float(n))


class InfoHidingLoss:
    """JAX/Pallas port of the PyTorch InfoHidingLoss module (forward only)."""

    def __init__(self, hiding_coef=1):
        self.hiding_coef = hiding_coef

    def __call__(self, extract_info, hiding_info):
        hiding_loss = _bce_with_logits_mean(extract_info, hiding_info)
        total_loss = self.hiding_coef * hiding_loss
        # TODO(synk): forward-only port — no custom_vjp is defined, so
        # jax.grad through the pallas_call is not supported here.
        return total_loss, {"hiding_loss": jax.lax.stop_gradient(hiding_loss)}


if __name__ == "__main__":
    key = jax.random.PRNGKey(0)
    k1, k2 = jax.random.split(key)

    # Small NCHW-shaped tensors, consistent with an image-hiding setup.
    shape = (2, 4, 16, 16)
    extract_info = jax.random.normal(k1, shape, dtype=jnp.float32)   # logits
    hiding_info = jax.random.uniform(k2, shape, dtype=jnp.float32)   # targets in [0,1]

    loss_mod = InfoHidingLoss(hiding_coef=1)
    total_loss, aux = loss_mod(extract_info, hiding_info)
    total_loss = jax.block_until_ready(total_loss)
    hiding_loss = jax.block_until_ready(aux["hiding_loss"])

    # Pure-JAX reference check.
    x = extract_info.astype(jnp.float32)
    y = hiding_info.astype(jnp.float32)
    ref = jnp.mean(jnp.maximum(x, 0.0) - x * y + jnp.log1p(jnp.exp(-jnp.abs(x))))
    assert jnp.allclose(total_loss, ref, rtol=1e-5, atol=1e-6), (total_loss, ref)
    assert jnp.allclose(hiding_loss, ref, rtol=1e-5, atol=1e-6)

    # Also exercise a larger, non-aligned size to hit the padded-tail +
    # two-shard ("parallel") path.
    n_big = 300_000  # not a multiple of 128 -> padded tail
    xb = jax.random.normal(k1, (n_big,), dtype=jnp.float32)
    yb = jax.random.uniform(k2, (n_big,), dtype=jnp.float32)
    big_total, big_aux = loss_mod(xb, yb)
    big_total = jax.block_until_ready(big_total)
    big_ref = jnp.mean(jnp.maximum(xb, 0.0) - xb * yb
                       + jnp.log1p(jnp.exp(-jnp.abs(xb))))
    assert jnp.allclose(big_total, big_ref, rtol=1e-5, atol=1e-6), (big_total, big_ref)

    print("KERNEL_OK")
</pallas_src>

<mosaic_0001>
module attributes {stable_mosaic.version = 11 : i64} {
  func.func @_bce_sum_kernel(%arg0: i32, %arg1: i32, %arg2: memref<16x128xf32, #tpu.memory_space<vmem>>, %arg3: memref<16x128xf32, #tpu.memory_space<vmem>>, %arg4: memref<1x1xf32, #tpu.memory_space<smem>>, %arg5: memref<8x128xf32, #tpu.memory_space<vmem>>) attributes {dimension_semantics = [#tpu.dimension_semantics<parallel>, #tpu.dimension_semantics<arbitrary>], iteration_bounds = array<i64: 1, 1>, scalar_prefetch = 0 : i64, scratch_operands = 1 : i64, tpu.core_type = #tpu.core_type<tc>, window_params = [{transform_indices = @transform_0, window_bounds = array<i64: 16, 128>}, {transform_indices = @transform_1, window_bounds = array<i64: 16, 128>}, {transform_indices = @transform_2, window_bounds = array<i64: 1, 1>}]} {
    %c0_i32 = arith.constant 0 : i32
    %0 = arith.cmpi eq, %arg1, %c0_i32 : i32
    %1 = arith.extui %0 : i1 to i32
    %c0_i32_0 = arith.constant 0 : i32
    %2 = arith.cmpi ne, %1, %c0_i32_0 : i32
    scf.if %2 {
      %cst_12 = arith.constant 0.000000e+00 : f32
      %23 = vector.broadcast %cst_12 : f32 to vector<8x128xf32>
      %c0_13 = arith.constant 0 : index
      %c0_14 = arith.constant 0 : index
      %24 = vector.load %arg5[%c0_13, %c0_14] : memref<8x128xf32, #tpu.memory_space<vmem>>, vector<8x128xf32>
      tpu.vector_store %arg5[%c0_13, %c0_14], %23 {strides = array<i32>} : memref<8x128xf32, #tpu.memory_space<vmem>>, vector<8x128xf32>,
    } else {
    }
    %c0 = arith.constant 0 : index
    %c0_1 = arith.constant 0 : index
    %3 = vector.load %arg2[%c0, %c0_1] : memref<16x128xf32, #tpu.memory_space<vmem>>, vector<16x128xf32>
    %c0_2 = arith.constant 0 : index
    %c0_3 = arith.constant 0 : index
    %4 = vector.load %arg3[%c0_2, %c0_3] : memref<16x128xf32, #tpu.memory_space<vmem>>, vector<16x128xf32>
    %cst = arith.constant 0.000000e+00 : f32
    %5 = vector.broadcast %cst : f32 to vector<16x128xf32>
    %6 = arith.maximumf %3, %5 : vector<16x128xf32>
    %7 = arith.mulf %3, %4 : vector<16x128xf32>
    %8 = arith.subf %6, %7 : vector<16x128xf32>
    %9 = math.absf %3 : vector<16x128xf32>
    %cst_4 = arith.constant 0.000000e+00 : f32
    %10 = vector.broadcast %cst_4 : f32 to vector<16x128xf32>
    %11 = arith.subf %10, %9 : vector<16x128xf32>
    %12 = math.exp %11 : vector<16x128xf32>
    %13 = math.log1p %12 : vector<16x128xf32>
    %14 = arith.addf %8, %13 : vector<16x128xf32>
    %c0_5 = arith.constant 0 : index
    %c0_6 = arith.constant 0 : index
    %15 = vector.load %arg5[%c0_5, %c0_6] : memref<8x128xf32, #tpu.memory_space<vmem>>, vector<8x128xf32>
    %16 = vector.shape_cast %14 : vector<16x128xf32> to vector<2x8x128xf32>
    %cst_7 = arith.constant dense<0.000000e+00> : vector<8x128xf32>
    %17 = vector.multi_reduction <add>, %16, %cst_7 [0] : vector<2x8x128xf32> to vector<8x128xf32>
    %18 = arith.addf %15, %17 : vector<8x128xf32>
    %c0_8 = arith.constant 0 : index
    %c0_9 = arith.constant 0 : index
    %19 = vector.load %arg5[%c0_8, %c0_9] : memref<8x128xf32, #tpu.memory_space<vmem>>, vector<8x128xf32>
    tpu.vector_store %arg5[%c0_8, %c0_9], %18 {strides = array<i32>} : memref<8x128xf32, #tpu.memory_space<vmem>>, vector<8x128xf32>,
    %c0_i32_10 = arith.constant 0 : i32
    %20 = arith.cmpi eq, %arg1, %c0_i32_10 : i32
    %21 = arith.extui %20 : i1 to i32
    %c0_i32_11 = arith.constant 0 : i32
    %22 = arith.cmpi ne, %21, %c0_i32_11 : i32
    scf.if %22 {
      %c0_12 = arith.constant 0 : index
      %c0_13 = arith.constant 0 : index
      %23 = vector.load %arg5[%c0_12, %c0_13] : memref<8x128xf32, #tpu.memory_space<vmem>>, vector<8x128xf32>
      %24 = vector.shape_cast %23 : vector<8x128xf32> to vector<1x8x128xf32>
      %cst_14 = arith.constant dense<0.000000e+00> : vector<1xf32>
      %25 = vector.multi_reduction <add>, %24, %cst_14 [1, 2] : vector<1x8x128xf32> to vector<1xf32>
      %26 = vector.shape_cast %25 : vector<1xf32> to vector<1x1x1xf32>
      %27 = vector.extract %26[0, 0, 0] : f32 from vector<1x1x1xf32>
      %c0_15 = arith.constant 0 : index
      %c0_16 = arith.constant 0 : index
      %28 = memref.load %arg4[%c0_15, %c0_16] : memref<1x1xf32, #tpu.memory_space<smem>>
      memref.store %27, %arg4[%c0_15, %c0_16] : memref<1x1xf32, #tpu.memory_space<smem>>
    } else {
    }
    return
  }
  func.func @transform_0(%arg0: i32, %arg1: i32) -> (i32, i32) {
    %c1_i32 = arith.constant 1 : i32
    %0 = arith.muli %arg0, %c1_i32 : i32
    %1 = arith.addi %0, %arg1 : i32
    %c0_i32 = arith.constant 0 : i32
    %c0_i32_0 = arith.constant 0 : i32
    return %1, %c0_i32 : i32, i32
  }
  func.func @transform_1(%arg0: i32, %arg1: i32) -> (i32, i32) {
    %c1_i32 = arith.constant 1 : i32
    %0 = arith.muli %arg0, %c1_i32 : i32
    %1 = arith.addi %0, %arg1 : i32
    %c0_i32 = arith.constant 0 : i32
    %c0_i32_0 = arith.constant 0 : i32
    return %1, %c0_i32 : i32, i32
  }
  func.func @transform_2(%arg0: i32, %arg1: i32) -> (i32, i32) {
    %c0_i32 = arith.constant 0 : i32
    %c0_i32_0 = arith.constant 0 : i32
    return %arg0, %c0_i32 : i32, i32
  }
}

</mosaic_0001>

<llo_original>
// kernel: tpu_custom_call.1
$region0: #{tpu_custom_call.1}
  #allocation0 [shape = 'u32[]', space=smem, size = 0x4, offset = 0x4, fixed_abs, tag = 'smem constant byte address 0x4 - core index']
  #allocation1 [shape = 'u32[72,128]{1,0:T(1,128)}', space=vmem, size = 0x9000, scoped, tag = 'internal scratch']
  #allocation2 [shape = 'f32[8,128]{1,0:T(8,128)}', space=vmem, size = 0x1000, scoped, tag = 'scratch operand']
  %s0 = inlined_call_operand.hbm [shape: f32[16,128], index: 0, kind: input, shape index: {}]
  %s1 = inlined_call_operand.hbm [shape: f32[16,128], index: 1, kind: input, shape index: {}]
  %s2 = inlined_call_operand.hbm [shape: f32[1,1], index: 2, kind: output, shape index: {}]
  %s3 = sld [smem:[#allocation0]]
  $region34: #{tpu_custom_call.1} parent=0
    _
  %s5 = ssub.s32 1, %s3
  %s6 = scalar_select 0, %s5, %s3
  $region1: #{tpu_custom_call.1} parent=0
    #allocation3 [shape = 'u8[8192]{0}', space=vmem, size = 0x2000, scoped, tag = 'input window, operand 0, single buffered']
    #allocation4 [shape = 's32[1]{0}', space=sflag, size = 0x4, scoped, tag = 'scoped memory for tpu_custom_call.1']
    #allocation5 [shape = 's32[1]{0}', space=sflag, size = 0x4, scoped, tag = 'scoped memory for tpu_custom_call.1']
    #allocation6 [shape = 'u8[8192]{0}', space=vmem, size = 0x2000, scoped, tag = 'input window, operand 1, single buffered']
    #allocation7 [shape = 's32[1]{0}', space=sflag, size = 0x4, scoped, tag = 'scoped memory for tpu_custom_call.1']
    #allocation8 [shape = 'u8[512]{0}', space=smem, size = 0x200, scoped, tag = 'output window, operand 0, single buffered']
    %7 = vsyncpa [#allocation4], 0
    %8 = vsyncpa [#allocation7], 0
    %9 = vsyncpa [#allocation5], 0
    // Predicated region
    $region2: #{tpu_custom_call.1} parent=1 // pred_check
      _
    $region3: #{tpu_custom_call.1} parent=1 // pred_check_branch
      %11 = sbr.rel (0) target = $region5
    $region4: #{tpu_custom_call.1} parent=1 // pred_region
      %s12 = sadd.s32 0, 0
      %s13 = smul.u32 2, %s12
      %15 = vsyncadd [#allocation4], 0
      %s16 = smul.addr %s13, 8
      %s17 = scalar_lea.hbm %s0, %s16
      %s18 = sshll.u32 %s17, 4
      %s19 = int_to_ptr.hbm [resolvable:$true] %s18
      %s20 = sshll.u32 [#allocation3], 4
      %s21 = int_to_ptr.vmem [resolvable:$true] %s20
      %26 = dma.hbm_to_vmem [thread:$0]  %s19, 256, %s21, [#allocation4], 128, 128, 8
    $region5: #{tpu_custom_call.1} parent=1 // pred_fallthru
      _
    // Predicated region
    $region6: #{tpu_custom_call.1} parent=1 // pred_check
      _
    $region7: #{tpu_custom_call.1} parent=1 // pred_check_branch
      %28 = sbr.rel (0) target = $region9
    $region8: #{tpu_custom_call.1} parent=1 // pred_region
      %s29 = sadd.s32 0, 0
      %s30 = smul.u32 2, %s29
      %32 = vsyncadd [#allocation7], 0
      %s33 = smul.addr %s30, 8
      %s34 = scalar_lea.hbm %s1, %s33
      %s35 = sshll.u32 %s34, 4
      %s36 = int_to_ptr.hbm [resolvable:$true] %s35
      %s37 = sshll.u32 [#allocation6], 4
      %s38 = int_to_ptr.vmem [resolvable:$true] %s37
      %43 = dma.hbm_to_vmem [thread:$0]  %s36, 256, %s38, [#allocation7], 128, 128, 8
    $region9: #{tpu_custom_call.1} parent=1 // pred_fallthru
      _
    // Predicated region
    $region10: #{tpu_custom_call.1} parent=1 // pred_check
      _
    $region11: #{tpu_custom_call.1} parent=1 // pred_check_branch
      %45 = sbr.rel (0) target = $region13
    $region12: #{tpu_custom_call.1} parent=1 // pred_region
      %47 = dma.done [#allocation4], 256
    $region13: #{tpu_custom_call.1} parent=1 // pred_fallthru
      _
    // Predicated region
    $region14: #{tpu_custom_call.1} parent=1 // pred_check
      _
    $region15: #{tpu_custom_call.1} parent=1 // pred_check_branch
      %49 = sbr.rel (0) target = $region17
    $region16: #{tpu_custom_call.1} parent=1 // pred_region
      %51 = dma.done [#allocation7], 256
    $region17: #{tpu_custom_call.1} parent=1 // pred_fallthru
      _
    %s52 = sadd.s32 0, 0
    %s53 = smul.u32 2, %s52
    %s54 = sadd.s32 0, 0
    %s55 = smul.u32 2, %s54
    %p56 = scmp.eq.s32.totalorder 0, 0
    // Predicated region
    $region18: #{tpu_custom_call.1} parent=1 // pred_check
      %p57 = pneg %p56
    $region19: #{tpu_custom_call.1} parent=1 // pred_check_branch
      %59 = sbr.rel (%p57) target = $region21
    $region20: #{tpu_custom_call.1} parent=1 // pred_region
      %60 = vst [vmem:[#allocation2] sm:$0xff] 0.0
    $region21: #{tpu_custom_call.1} parent=1 // pred_fallthru
      _
    %v61 = vld [vmem:[#allocation3] sm:$0xff]
    %v62 = vld [vmem:[#allocation3 + $0x8] sm:$0xff]
    %v63 = vld [vmem:[#allocation6] sm:$0xff]
    %v64 = vld [vmem:[#allocation6 + $0x8] sm:$0xff]
    %v65 = vmax.f32 %v61, 0.0
    %v66 = vmax.f32 %v62, 0.0
    %v67 = vmul.f32 %v61, %v63
    %v68 = vmul.f32 %v62, %v64
    %v69 = vsub.f32 %v65, %v67
    %v70 = vsub.f32 %v66, %v68
    %v71 = vand.u32 2147483647, %v61
    %v72 = vand.u32 2147483647, %v62
    %v73 = vsub.f32 0.0, %v71
    %v74 = vsub.f32 0.0, %v72
    %v75 = vmul.f32 %v73, 1.442695
    %v76 = vpow.pop %v75
    %v77 = vmul.f32 %v74, 1.442695
    %v78 = vpow.pop %v77
    %v79 = vadd.f32 %v76, 1.0
    %v80 = vlog2.pop %v79
    %v81 = vmul.f32 %v80, 0.6931472
    %v82 = vmul.f32 -0.5, %v76
    %v83 = vadd.f32 %v82, 1.0
    %v84 = vmul.f32 %v83, %v76
    %v85 = vand.u32 2147483647, %v76
    %vm86 = vcmp.lt.f32.partialorder %v85, 0.0004427343
    %v87 = vsel %vm86, %v84, %v81
    %v88 = vadd.f32 %v78, 1.0
    %v89 = vlog2.pop %v88
    %v90 = vmul.f32 %v89, 0.6931472
    %v91 = vmul.f32 -0.5, %v78
    %v92 = vadd.f32 %v91, 1.0
    %v93 = vmul.f32 %v92, %v78
    %v94 = vand.u32 2147483647, %v78
    %vm95 = vcmp.lt.f32.partialorder %v94, 0.0004427343
    %v96 = vsel %vm95, %v93, %v90
    %v97 = vadd.f32 %v69, %v87
    %v98 = vadd.f32 %v70, %v96
    %v99 = vld [vmem:[#allocation2] sm:$0xff]
    %v100 = vadd.f32 %v97, %v98
    %v101 = vadd.f32 %v99, %v100
    %102 = vst [vmem:[#allocation2] sm:$0xff] %v101
    // Predicated region
    $region22: #{tpu_custom_call.1} parent=1 // pred_check
      %p103 = pneg %p56
    $region23: #{tpu_custom_call.1} parent=1 // pred_check_branch
      %105 = sbr.rel (%p103) target = $region25
    $region24: #{tpu_custom_call.1} parent=1 // pred_region
      %v106 = vld [vmem:[#allocation2] sm:$0xff]
      %107 = vadd.xlane.f32.xlu0 %v106
      %v108 = vpop.xlane.xlu0 %107
      %v109 = vrot.slane %v108, 4
      %v110 = vadd.f32 %v108, %v109
      %v111 = vrot.slane %v110, 2
      %v112 = vadd.f32 %v110, %v111
      %v113 = vrot.slane %v112, 1
      %v114 = vadd.f32 %v112, %v113
      %s115 = vtos %v114
      %s116 = scalar_lea.smem [#allocation8], 0
      %117 = sst [smem:[%s116]] %s115
    $region25: #{tpu_custom_call.1} parent=1 // pred_fallthru
      _
    // Predicated region
    $region26: #{tpu_custom_call.1} parent=1 // pred_check
      _
    $region27: #{tpu_custom_call.1} parent=1 // pred_check_branch
      %119 = sbr.rel (0) target = $region29
    $region28: #{tpu_custom_call.1} parent=1 // pred_region
      %121 = vsyncadd [#allocation5], 0
      %s123 = sshll.u32 %s2, 4
      %s124 = int_to_ptr.hbm [resolvable:$true] %s123
      %126 = dma.smem_to_hbm [#allocation8], 16, %s124, [#allocation5]
    $region29: #{tpu_custom_call.1} parent=1 // pred_fallthru
      _
    // Predicated region
    $region30: #{tpu_custom_call.1} parent=1 // pred_check
      _
    $region31: #{tpu_custom_call.1} parent=1 // pred_check_branch
      %128 = sbr.rel (0) target = $region33
    $region32: #{tpu_custom_call.1} parent=1 // pred_region
      %130 = dma.done [#allocation5], 16
    $region33: #{tpu_custom_call.1} parent=1 // pred_fallthru
      _
    %131 = sfence
    %132 = vsyncpa [#allocation4], 1
    %133 = vsyncpa [#allocation7], 1
    %134 = vsyncpa [#allocation5], 1

</llo_original>
